<compile_context>
chip_gen: v6e
topology: v6e:2x2x1
jax: 0.10.0
libtpu: 0.0.40
codegen_flags: <defaults>
</compile_context>

<pallas_src>
import math

import jax
import jax.numpy as jnp
import numpy as np
from jax import lax
from jax.experimental import pallas as pl
from jax.experimental.pallas import tpu as pltpu


# ----------------------------------------------------------------------------
# tiling helper
# ----------------------------------------------------------------------------
def _pick_tile(dim, align, cap):
    """Largest tile <= cap that divides `dim` and is a multiple of `align`;
    falls back to the full dimension (always a legal block size)."""
    if dim <= cap or dim % align != 0:
        return dim
    for t in range(cap - cap % align, 0, -align):
        if dim % t == 0:
            return t
    return dim


# ----------------------------------------------------------------------------
# tiled linear kernel (bias fused, bf16 MXU operands, f32 accumulation)
# ----------------------------------------------------------------------------
def _linear_kernel(x_ref, wt_ref, b_ref, o_ref, acc_ref):
    # grid = (M/tm, N/tn, K/tk); K is the innermost "arbitrary" axis.
    @pl.when(pl.program_id(2) == 0)
    def _init():
        acc_ref[...] = jnp.zeros_like(acc_ref)

    acc_ref[...] += jnp.dot(
        x_ref[...].astype(jnp.bfloat16),
        wt_ref[...].astype(jnp.bfloat16),
        preferred_element_type=jnp.float32,
    )

    @pl.when(pl.program_id(2) == pl.num_programs(2) - 1)
    def _finalize():
        o_ref[...] = (acc_ref[...] + b_ref[...]).astype(o_ref.dtype)


def pallas_linear(x2d, w, b):
    """x2d: (M, K), w: (N, K) (PyTorch nn.Linear layout), b: (N,) -> (M, N)."""
    M, K = x2d.shape
    N = w.shape[0]
    wt = w.T                      # (K, N): contraction over K in natural layout
    b2 = b.reshape(1, N)

    tm = _pick_tile(M, 8, 256)
    tn = _pick_tile(N, 128, 512)
    tk = _pick_tile(K, 128, 512)
    grid = (M // tm, N // tn, K // tk)

    return pl.pallas_call(
        _linear_kernel,
        out_shape=jax.ShapeDtypeStruct((M, N), jnp.float32),
        grid=grid,
        in_specs=[
            pl.BlockSpec((tm, tk), lambda i, j, k: (i, k)),
            pl.BlockSpec((tk, tn), lambda i, j, k: (k, j)),
            pl.BlockSpec((1, tn), lambda i, j, k: (0, j)),
        ],
        out_specs=pl.BlockSpec((tm, tn), lambda i, j, k: (i, j)),
        scratch_shapes=[pltpu.VMEM((tm, tn), jnp.float32)],
        compiler_params=pltpu.CompilerParams(
            dimension_semantics=("parallel", "parallel", "arbitrary"),
            vmem_limit_bytes=32 * 1024 * 1024,
        ),
        cost_estimate=pl.CostEstimate(
            flops=int(2 * M * N * K),
            transcendentals=0,
            bytes_accessed=int(4 * (M * K + K * N + M * N)),
        ),
    )(x2d, wt, b2)


# ----------------------------------------------------------------------------
# flash-style attention kernel with fused rotary (+ query scale)
# ----------------------------------------------------------------------------
def _make_attn_kernel(num_heads, head_dim):
    def kernel(q_ref, k_ref, v_ref, cq_ref, sq_ref, ck_ref, sk_ref, rot_ref,
               o_ref, m_ref, l_ref, acc_ref):
        kv = pl.program_id(2)

        @pl.when(kv == 0)
        def _init():
            m_ref[...] = jnp.full_like(m_ref, -jnp.inf)
            l_ref[...] = jnp.zeros_like(l_ref)
            acc_ref[...] = jnp.zeros_like(acc_ref)

        rot = rot_ref[...]                    # (D, D) rotate-half matrix
        cq, sq = cq_ref[...], sq_ref[...]     # (tq, D); 1/sqrt(D) folded in
        ck, sk = ck_ref[...], sk_ref[...]     # (tk, D)
        q_all = q_ref[0]                      # (tq, H*D) f32
        k_all = k_ref[0]                      # (tk, H*D)
        v_all = v_ref[0]

        for h in range(num_heads):
            lo, hi = h * head_dim, (h + 1) * head_dim
            qh = q_all[:, lo:hi]              # (tq, D)
            kh = k_all[:, lo:hi]              # (tk, D)
            vh = v_all[:, lo:hi]

            # fused rotary (and query scale): x*cos + rotate_half(x)*sin
            qh = qh * cq + jnp.dot(qh, rot, preferred_element_type=jnp.float32) * sq
            kh = kh * ck + jnp.dot(kh, rot, preferred_element_type=jnp.float32) * sk

            # scores: contract over D of both operands (no explicit k.T)
            s = lax.dot_general(
                qh.astype(jnp.bfloat16), kh.astype(jnp.bfloat16),
                dimension_numbers=(((1,), (1,)), ((), ())),
                preferred_element_type=jnp.float32,
            )                                  # (tq, tk) f32

            # online softmax update (f32 statistics)
            m_prev = m_ref[h]                  # (tq, 1)
            l_prev = l_ref[h]
            m_new = jnp.maximum(m_prev, jnp.max(s, axis=-1, keepdims=True))
            alpha = jnp.exp(m_prev - m_new)
            p = jnp.exp(s - m_new)
            l_ref[h] = alpha * l_prev + jnp.sum(p, axis=-1, keepdims=True)
            acc_ref[h] = alpha * acc_ref[h] + jnp.dot(
                p.astype(jnp.bfloat16), vh.astype(jnp.bfloat16),
                preferred_element_type=jnp.float32,
            )
            m_ref[h] = m_new

        @pl.when(kv == pl.num_programs(2) - 1)
        def _finalize():
            for h in range(num_heads):
                lo, hi = h * head_dim, (h + 1) * head_dim
                inv = pl.reciprocal(l_ref[h], approx=True)   # EUP slot
                o_ref[0, :, lo:hi] = (acc_ref[h] * inv).astype(o_ref.dtype)

    return kernel


def pallas_attention(q, k, v, cos_q, sin_q, cos_k, sin_k, rot_mat, num_heads):
    """q: (B, Lq, H*D), k/v: (B, Lk, H*D) -> (B, Lq, H*D). Rotary fused."""
    B, Lq, dim = q.shape
    Lk = k.shape[1]
    D = dim // num_heads

    tq = _pick_tile(Lq, 8, 256)
    tk = _pick_tile(Lk, 8, 512)
    grid = (B, Lq // tq, Lk // tk)

    return pl.pallas_call(
        _make_attn_kernel(num_heads, D),
        out_shape=jax.ShapeDtypeStruct((B, Lq, dim), jnp.float32),
        grid=grid,
        in_specs=[
            pl.BlockSpec((1, tq, dim), lambda b, qi, kc: (b, qi, 0)),
            pl.BlockSpec((1, tk, dim), lambda b, qi, kc: (b, kc, 0)),
            pl.BlockSpec((1, tk, dim), lambda b, qi, kc: (b, kc, 0)),
            pl.BlockSpec((tq, D), lambda b, qi, kc: (qi, 0)),
            pl.BlockSpec((tq, D), lambda b, qi, kc: (qi, 0)),
            pl.BlockSpec((tk, D), lambda b, qi, kc: (kc, 0)),
            pl.BlockSpec((tk, D), lambda b, qi, kc: (kc, 0)),
            pl.BlockSpec((D, D), lambda b, qi, kc: (0, 0)),
        ],
        out_specs=pl.BlockSpec((1, tq, dim), lambda b, qi, kc: (b, qi, 0)),
        scratch_shapes=[
            pltpu.VMEM((num_heads, tq, 1), jnp.float32),   # running max
            pltpu.VMEM((num_heads, tq, 1), jnp.float32),   # running denom
            pltpu.VMEM((num_heads, tq, D), jnp.float32),   # output accumulator
        ],
        compiler_params=pltpu.CompilerParams(
            dimension_semantics=("parallel", "parallel", "arbitrary"),
            vmem_limit_bytes=32 * 1024 * 1024,
        ),
        cost_estimate=pl.CostEstimate(
            flops=int(4 * B * num_heads * Lq * Lk * D),
            transcendentals=int(B * num_heads * Lq * Lk),
            bytes_accessed=int(4 * (q.size + k.size + v.size + B * Lq * dim)),
        ),
    )(q, k, v, cos_q, sin_q, cos_k, sin_k, rot_mat)


# ----------------------------------------------------------------------------
# rotary tables (lucidrains RotaryEmbedding(head_dim // 2, theta=1e4))
# ----------------------------------------------------------------------------
def _rope_tables(length, head_dim, rot_dim, theta, scale):
    """cos/sin of shape (length, head_dim); features >= rot_dim pass through
    (cos=1, sin=0). `scale` (query 1/sqrt(D) or 1.0) is folded in."""
    pos = jnp.arange(length, dtype=jnp.float32)
    inv_freq = 1.0 / (theta ** (jnp.arange(0, rot_dim, 2, dtype=jnp.float32) / rot_dim))
    ang = pos[:, None] * inv_freq[None, :]          # (L, rot_dim // 2)
    ang = jnp.repeat(ang, 2, axis=-1)               # (L, rot_dim): a0,a0,a1,a1,...
    pad = head_dim - rot_dim
    cos = jnp.concatenate([jnp.cos(ang), jnp.ones((length, pad), jnp.float32)], axis=-1)
    sin = jnp.concatenate([jnp.sin(ang), jnp.zeros((length, pad), jnp.float32)], axis=-1)
    return cos * scale, sin * scale


def _rotate_half_matrix(head_dim, rot_dim):
    """R such that x @ R == interleaved rotate_half(x) on the first rot_dim
    features and 0 elsewhere (sin is 0 there anyway)."""
    r = np.zeros((head_dim, head_dim), np.float32)
    for t in range(0, rot_dim, 2):
        r[t + 1, t] = -1.0
        r[t, t + 1] = 1.0
    return jnp.asarray(r)


# ----------------------------------------------------------------------------
# full forward pass (matches MultiHeadCrossAttention.forward, attn_mask=None)
# ----------------------------------------------------------------------------
def multi_head_cross_attention(params, q_in, k_in, v_in, num_heads, rotary_pos_emb=True):
    B, Lq, dim = q_in.shape
    Lk = k_in.shape[1]
    head_dim = dim // num_heads
    rot_dim = head_dim // 2                 # RotaryEmbedding(head_dim // 2)
    scale = 1.0 / math.sqrt(head_dim)

    # projections (tiled Pallas GEMMs)
    q = pallas_linear(q_in.reshape(B * Lq, dim), params["Wq"], params["bq"]).reshape(B, Lq, dim)
    k = pallas_linear(k_in.reshape(B * Lk, dim), params["Wk"], params["bk"]).reshape(B, Lk, dim)
    v = pallas_linear(v_in.reshape(B * Lk, dim), params["Wv"], params["bv"]).reshape(B, Lk, dim)

    if rotary_pos_emb:
        cos_q, sin_q = _rope_tables(Lq, head_dim, rot_dim, 10000.0, scale)
        cos_k, sin_k = _rope_tables(Lk, head_dim, rot_dim, 10000.0, 1.0)
    else:
        cos_q = jnp.full((Lq, head_dim), scale, jnp.float32)
        sin_q = jnp.zeros((Lq, head_dim), jnp.float32)
        cos_k = jnp.ones((Lk, head_dim), jnp.float32)
        sin_k = jnp.zeros((Lk, head_dim), jnp.float32)
    rot_mat = _rotate_half_matrix(head_dim, rot_dim)

    # attention in (B, L, H*D) layout: rotary + scale fused, no head transposes
    attn = pallas_attention(q, k, v, cos_q, sin_q, cos_k, sin_k, rot_mat, num_heads)

    # output projection (tiled Pallas GEMM)
    out = pallas_linear(attn.reshape(B * Lq, dim), params["Wo"], params["bo"]).reshape(B, Lq, dim)
    return out


# ----------------------------------------------------------------------------
# pure-JAX f32 reference (for a correctness check against the Pallas path)
# ----------------------------------------------------------------------------
def apply_rotary_ref(x, rot_dim, theta=10000.0):
    L = x.shape[-2]
    pos = jnp.arange(L, dtype=jnp.float32)
    inv_freq = 1.0 / (theta ** (jnp.arange(0, rot_dim, 2, dtype=jnp.float32) / rot_dim))
    angles = pos[:, None] * inv_freq[None, :]
    angles = jnp.repeat(angles, 2, axis=-1)
    cos, sin = jnp.cos(angles), jnp.sin(angles)
    x_rot, x_pass = x[..., :rot_dim], x[..., rot_dim:]
    x1, x2 = x_rot[..., 0::2], x_rot[..., 1::2]
    rot_half = jnp.stack([-x2, x1], axis=-1).reshape(x_rot.shape)
    return jnp.concatenate([x_rot * cos + rot_half * sin, x_pass], axis=-1)


def reference_forward(params, q_in, k_in, v_in, num_heads, rotary_pos_emb=True):
    B, Lq, dim = q_in.shape
    Lk = k_in.shape[1]
    head_dim = dim // num_heads
    rot_dim = head_dim // 2
    lin = lambda x, W, b: x @ W.T + b
    q = lin(q_in, params["Wq"], params["bq"]).reshape(B, Lq, num_heads, head_dim).transpose(0, 2, 1, 3)
    k = lin(k_in, params["Wk"], params["bk"]).reshape(B, Lk, num_heads, head_dim).transpose(0, 2, 1, 3)
    v = lin(v_in, params["Wv"], params["bv"]).reshape(B, Lk, num_heads, head_dim).transpose(0, 2, 1, 3)
    if rotary_pos_emb:
        q = apply_rotary_ref(q, rot_dim)
        k = apply_rotary_ref(k, rot_dim)
    s = jnp.einsum("bhqd,bhkd->bhqk", q, k) / math.sqrt(head_dim)
    p = jax.nn.softmax(s, axis=-1)
    o = jnp.einsum("bhqk,bhkd->bhqd", p, v)
    o = o.transpose(0, 2, 1, 3).reshape(B, Lq, dim)
    return lin(o, params["Wo"], params["bo"])


# ----------------------------------------------------------------------------
if __name__ == "__main__":
    B, num_heads, dim = 2, 2, 32
    Lq, Lk = 8, 16

    key = jax.random.PRNGKey(0)
    ks = jax.random.split(key, 11)
    bound = 1.0 / math.sqrt(dim)        # nn.Linear default init range

    params = {
        "Wq": jax.random.uniform(ks[0], (dim, dim), jnp.float32, -bound, bound),
        "bq": jax.random.uniform(ks[1], (dim,), jnp.float32, -bound, bound),
        "Wk": jax.random.uniform(ks[2], (dim, dim), jnp.float32, -bound, bound),
        "bk": jax.random.uniform(ks[3], (dim,), jnp.float32, -bound, bound),
        "Wv": jax.random.uniform(ks[4], (dim, dim), jnp.float32, -bound, bound),
        "bv": jax.random.uniform(ks[5], (dim,), jnp.float32, -bound, bound),
        "Wo": jax.random.uniform(ks[6], (dim, dim), jnp.float32, -bound, bound),
        "bo": jax.random.uniform(ks[7], (dim,), jnp.float32, -bound, bound),
    }

    q = jax.random.normal(ks[8], (B, Lq, dim), jnp.float32)
    k = jax.random.normal(ks[9], (B, Lk, dim), jnp.float32)
    v = jax.random.normal(ks[10], (B, Lk, dim), jnp.float32)

    out = multi_head_cross_attention(params, q, k, v, num_heads, rotary_pos_emb=True)
    out = jax.block_until_ready(out)

    ref = reference_forward(params, q, k, v, num_heads, rotary_pos_emb=True)
    assert out.shape == (B, Lq, dim)
    # bf16 MXU operands (f32 accumulation) => loosened tolerance vs f32 reference
    err = float(jnp.max(jnp.abs(out - ref)))
    assert jnp.allclose(out, ref, atol=5e-2, rtol=5e-2), f"mismatch vs reference, max|diff|={err}"

    print("KERNEL_OK")
</pallas_src>

<mosaic_0001>
module attributes {stable_mosaic.version = 11 : i64} {
  func.func @_linear_kernel(%arg0: i32, %arg1: i32, %arg2: i32, %arg3: memref<16x32xf32, #tpu.memory_space<vmem>>, %arg4: memref<32x32xf32, #tpu.memory_space<vmem>>, %arg5: memref<1x32xf32, #tpu.memory_space<vmem>>, %arg6: memref<16x32xf32, #tpu.memory_space<vmem>>, %arg7: memref<16x32xf32, #tpu.memory_space<vmem>>) attributes {dimension_semantics = [#tpu.dimension_semantics<parallel>, #tpu.dimension_semantics<parallel>, #tpu.dimension_semantics<arbitrary>], iteration_bounds = array<i64: 1, 1, 1>, scalar_prefetch = 0 : i64, scratch_operands = 1 : i64, tpu.core_type = #tpu.core_type<tc>, window_params = [{transform_indices = @transform_0, window_bounds = array<i64: 16, 32>}, {transform_indices = @transform_1, window_bounds = array<i64: 32, 32>}, {transform_indices = @transform_2, window_bounds = array<i64: 1, 32>}, {transform_indices = @transform_3, window_bounds = array<i64: 16, 32>}]} {
    %c0_i32 = arith.constant 0 : i32
    %0 = arith.cmpi eq, %arg2, %c0_i32 : i32
    %1 = arith.extui %0 : i1 to i32
    %c0_i32_0 = arith.constant 0 : i32
    %2 = arith.cmpi ne, %1, %c0_i32_0 : i32
    scf.if %2 {
      %cst_10 = arith.constant 0.000000e+00 : f32
      %14 = vector.broadcast %cst_10 : f32 to vector<16x32xf32>
      %c0_11 = arith.constant 0 : index
      %c0_12 = arith.constant 0 : index
      %15 = vector.load %arg7[%c0_11, %c0_12] : memref<16x32xf32, #tpu.memory_space<vmem>>, vector<16x32xf32>
      tpu.vector_store %arg7[%c0_11, %c0_12], %14 {strides = array<i32>} : memref<16x32xf32, #tpu.memory_space<vmem>>, vector<16x32xf32>,
    } else {
    }
    %c0 = arith.constant 0 : index
    %c0_1 = arith.constant 0 : index
    %3 = vector.load %arg7[%c0, %c0_1] : memref<16x32xf32, #tpu.memory_space<vmem>>, vector<16x32xf32>
    %c0_2 = arith.constant 0 : index
    %c0_3 = arith.constant 0 : index
    %4 = vector.load %arg3[%c0_2, %c0_3] : memref<16x32xf32, #tpu.memory_space<vmem>>, vector<16x32xf32>
    %5 = arith.truncf %4 : vector<16x32xf32> to vector<16x32xbf16>
    %c0_4 = arith.constant 0 : index
    %c0_5 = arith.constant 0 : index
    %6 = vector.load %arg4[%c0_4, %c0_5] : memref<32x32xf32, #tpu.memory_space<vmem>>, vector<32x32xf32>
    %7 = arith.truncf %6 : vector<32x32xf32> to vector<32x32xbf16>
    %cst = arith.constant dense<0.000000e+00> : vector<16x32xf32>
    %8 = tpu.matmul %5, %7, %cst {dimension_numbers = #tpu.dot_dimension_numbers<[1], [0], [0], [1], [0, 0, 1, 1], [], []>} : vector<16x32xbf16>, vector<32x32xbf16>, vector<16x32xf32> -> vector<16x32xf32>
    %9 = arith.addf %3, %8 : vector<16x32xf32>
    %c0_6 = arith.constant 0 : index
    %c0_7 = arith.constant 0 : index
    %10 = vector.load %arg7[%c0_6, %c0_7] : memref<16x32xf32, #tpu.memory_space<vmem>>, vector<16x32xf32>
    tpu.vector_store %arg7[%c0_6, %c0_7], %9 {strides = array<i32>} : memref<16x32xf32, #tpu.memory_space<vmem>>, vector<16x32xf32>,
    %c0_i32_8 = arith.constant 0 : i32
    %11 = arith.cmpi eq, %arg2, %c0_i32_8 : i32
    %12 = arith.extui %11 : i1 to i32
    %c0_i32_9 = arith.constant 0 : i32
    %13 = arith.cmpi ne, %12, %c0_i32_9 : i32
    scf.if %13 {
      %c0_10 = arith.constant 0 : index
      %c0_11 = arith.constant 0 : index
      %14 = vector.load %arg7[%c0_10, %c0_11] : memref<16x32xf32, #tpu.memory_space<vmem>>, vector<16x32xf32>
      %c0_12 = arith.constant 0 : index
      %c0_13 = arith.constant 0 : index
      %15 = vector.load %arg5[%c0_12, %c0_13] : memref<1x32xf32, #tpu.memory_space<vmem>>, vector<1x32xf32>
      %16 = vector.broadcast %15 : vector<1x32xf32> to vector<16x32xf32>
      %17 = arith.addf %14, %16 : vector<16x32xf32>
      %c0_14 = arith.constant 0 : index
      %c0_15 = arith.constant 0 : index
      %18 = vector.load %arg6[%c0_14, %c0_15] : memref<16x32xf32, #tpu.memory_space<vmem>>, vector<16x32xf32>
      tpu.vector_store %arg6[%c0_14, %c0_15], %17 {strides = array<i32>} : memref<16x32xf32, #tpu.memory_space<vmem>>, vector<16x32xf32>,
    } else {
    }
    return
  }
  func.func @transform_0(%arg0: i32, %arg1: i32, %arg2: i32) -> (i32, i32) {
    %c0_i32 = arith.constant 0 : i32
    return %arg0, %arg2 : i32, i32
  }
  func.func @transform_1(%arg0: i32, %arg1: i32, %arg2: i32) -> (i32, i32) {
    %c0_i32 = arith.constant 0 : i32
    return %arg2, %arg1 : i32, i32
  }
  func.func @transform_2(%arg0: i32, %arg1: i32, %arg2: i32) -> (i32, i32) {
    %c0_i32 = arith.constant 0 : i32
    %c0_i32_0 = arith.constant 0 : i32
    return %c0_i32, %arg1 : i32, i32
  }
  func.func @transform_3(%arg0: i32, %arg1: i32, %arg2: i32) -> (i32, i32) {
    %c0_i32 = arith.constant 0 : i32
    return %arg0, %arg1 : i32, i32
  }
}

</mosaic_0001>

<llo_original>
// kernel: tpu_custom_call.1
$region0: #{tpu_custom_call.1}
  #allocation0 [shape = 'u32[]', space=smem, size = 0x4, offset = 0x4, fixed_abs, tag = 'smem constant byte address 0x4 - core index']
  #allocation1 [shape = 'u32[144,128]{1,0:T(1,128)}', space=vmem, size = 0x12000, scoped, tag = 'internal scratch']
  #allocation2 [shape = 'f32[16,32]{1,0:T(8,128)}', space=vmem, size = 0x2000, scoped, tag = 'scratch operand']
  %s0 = inlined_call_operand.hbm [shape: f32[16,32], index: 0, kind: input, shape index: {}]
  %s1 = inlined_call_operand.hbm [shape: f32[32,32], index: 1, kind: input, shape index: {}]
  %s2 = inlined_call_operand.vmem [shape: f32[1,32], index: 2, kind: input, shape index: {}]
  %s3 = inlined_call_operand.hbm [shape: f32[16,32], index: 3, kind: output, shape index: {}]
  %s4 = sld [smem:[#allocation0]]
  $region38: #{tpu_custom_call.1} parent=0
    _
  %s6 = ssub.s32 1, %s4
  %s7 = scalar_select 0, %s6, %s4
  $region1: #{tpu_custom_call.1} parent=0
    #allocation3 [shape = 'u8[8192]{0}', space=vmem, size = 0x2000, scoped, tag = 'input window, operand 0, single buffered']
    #allocation4 [shape = 's32[1]{0}', space=sflag, size = 0x4, scoped, tag = 'scoped memory for tpu_custom_call.1']
    #allocation5 [shape = 's32[1]{0}', space=sflag, size = 0x4, scoped, tag = 'scoped memory for tpu_custom_call.1']
    #allocation6 [shape = 'u8[16384]{0}', space=vmem, size = 0x4000, scoped, tag = 'input window, operand 1, single buffered']
    #allocation7 [shape = 's32[1]{0}', space=sflag, size = 0x4, scoped, tag = 'scoped memory for tpu_custom_call.1']
    #allocation8 [shape = 'u8[8192]{0}', space=vmem, size = 0x2000, scoped, tag = 'output window, operand 0, single buffered']
    %8 = vsyncpa [#allocation4], 0
    %9 = vsyncpa [#allocation7], 0
    %10 = vsyncpa [#allocation5], 0
    // Predicated region
    $region2: #{tpu_custom_call.1} parent=1 // pred_check
      _
    $region3: #{tpu_custom_call.1} parent=1 // pred_check_branch
      %12 = sbr.rel (0) target = $region5
    $region4: #{tpu_custom_call.1} parent=1 // pred_region
      %s14 = ssub.s32 256, 256
      %15 = vsyncadd [#allocation4], %s14
      %s16 = sshll.u32 [#allocation3], 4
      %s17 = int_to_ptr.vmem [resolvable:$true] %s16
      %22 = dma.hbm_to_vmem [thread:$0]  %s0, 256, %s17, [#allocation4], 128, 128, 8
    $region5: #{tpu_custom_call.1} parent=1 // pred_fallthru
      _
    // Predicated region
    $region6: #{tpu_custom_call.1} parent=1 // pred_check
      _
    $region7: #{tpu_custom_call.1} parent=1 // pred_check_branch
      %24 = sbr.rel (0) target = $region9
    $region8: #{tpu_custom_call.1} parent=1 // pred_region
      %s26 = ssub.s32 512, 512
      %27 = vsyncadd [#allocation7], %s26
      %s28 = sshll.u32 [#allocation6], 4
      %s29 = int_to_ptr.vmem [resolvable:$true] %s28
      %34 = dma.hbm_to_vmem [thread:$0]  %s1, 512, %s29, [#allocation7], 128, 128, 8
    $region9: #{tpu_custom_call.1} parent=1 // pred_fallthru
      _
    // Predicated region
    $region10: #{tpu_custom_call.1} parent=1 // pred_check
      _
    $region11: #{tpu_custom_call.1} parent=1 // pred_check_branch
      %36 = sbr.rel (0) target = $region13
    $region12: #{tpu_custom_call.1} parent=1 // pred_region
      _
    $region13: #{tpu_custom_call.1} parent=1 // pred_fallthru
      _
    // Predicated region
    $region14: #{tpu_custom_call.1} parent=1 // pred_check
      _
    $region15: #{tpu_custom_call.1} parent=1 // pred_check_branch
      %38 = sbr.rel (0) target = $region17
    $region16: #{tpu_custom_call.1} parent=1 // pred_region
      %39 = dma.done [#allocation4], 256
    $region17: #{tpu_custom_call.1} parent=1 // pred_fallthru
      _
    // Predicated region
    $region18: #{tpu_custom_call.1} parent=1 // pred_check
      _
    $region19: #{tpu_custom_call.1} parent=1 // pred_check_branch
      %41 = sbr.rel (0) target = $region21
    $region20: #{tpu_custom_call.1} parent=1 // pred_region
      %42 = dma.done [#allocation7], 512
    $region21: #{tpu_custom_call.1} parent=1 // pred_fallthru
      _
    %p44 = scmp.eq.s32.totalorder 0, 0
    // Predicated region
    $region22: #{tpu_custom_call.1} parent=1 // pred_check
      %p45 = pneg %p44
    $region23: #{tpu_custom_call.1} parent=1 // pred_check_branch
      %47 = sbr.rel (%p45) target = $region25
    $region24: #{tpu_custom_call.1} parent=1 // pred_region
      %vm48 = vcmask 261120
      %49 = vst.msk [vmem:[#allocation2] sm:$0xff] %vm48, 0.0
      %50 = vst.msk [vmem:[#allocation2 + $0x8] sm:$0xff] %vm48, 0.0
    $region25: #{tpu_custom_call.1} parent=1 // pred_fallthru
      _
    %v51 = vld [vmem:[#allocation2] sm:$0xff]
    %v52 = vld [vmem:[#allocation2 + $0x8] sm:$0xff]
    %v53 = vld [vmem:[#allocation3] sm:$0xff]
    %v54 = vld [vmem:[#allocation3 + $0x8] sm:$0xff]
    %v55 = vpack.c.bf16 %v54, %v53
    %v56 = vld [vmem:[#allocation6] sm:$0xff]
    %v57 = vld [vmem:[#allocation6 + $0x8] sm:$0xff]
    %v58 = vld [vmem:[#allocation6 + $0x10] sm:$0xff]
    %v59 = vld [vmem:[#allocation6 + $0x18] sm:$0xff]
    %v60 = vpack.c.bf16 %v57, %v56
    %v61 = vpack.c.bf16 %v59, %v58
    %vm62 = vcmask 261120
    %v64 = vsel %vm62, %v55, 0
    %66 = vmatprep.subr.bf16.mxu0 0
    %67 = vmatpush1.bf16.msra.mxu0 0
    %68 = vmatprep.subr.bf16.mxu0 0
    %69 = vmatpush1.bf16.msra.mxu0 0
    %70 = vmatprep.subr.bf16.mxu0 0
    %71 = vmatpush1.bf16.msra.mxu0 0
    %72 = vmatprep.subr.bf16.mxu0 0
    %73 = vmatpush1.bf16.msra.mxu0 0
    %74 = vmatprep.subr.bf16.mxu0 0
    %75 = vmatpush1.bf16.msra.mxu0 0
    %76 = vmatprep.subr.bf16.mxu0 0
    %77 = vmatpush1.bf16.msra.mxu0 0
    %78 = vmatprep.subr.bf16.mxu0 0
    %79 = vmatpush1.bf16.msra.mxu0 %v61
    %80 = vmatprep.subr.bf16.mxu0 0
    %81 = vmatpush1.bf16.msra.mxu0 %v60
    %82 = vmatprep.subr.bf16.mxu0 0
    %83 = vmatpush2.bf16.msra.mxu0 0
    %84 = vmatprep.subr.bf16.mxu0 0
    %85 = vmatpush2.bf16.msra.mxu0 0
    %86 = vmatprep.subr.bf16.mxu0 0
    %87 = vmatpush2.bf16.msra.mxu0 0
    %88 = vmatprep.subr.bf16.mxu0 0
    %89 = vmatpush2.bf16.msra.mxu0 0
    %90 = vmatprep.subr.bf16.mxu0 0
    %91 = vmatpush2.bf16.msra.mxu0 0
    %92 = vmatprep.subr.bf16.mxu0 0
    %93 = vmatpush2.bf16.msra.mxu0 0
    %94 = vmatprep.subr.bf16.mxu0 0
    %95 = vmatpush2.bf16.msra.mxu0 0
    %96 = vmatprep.subr.bf16.mxu0 0
    %97 = vmatpush2.bf16.msra.mxu0 0
    %98 = vmatprep.mubr.bf16.mxu0 0
    %99 = vmatmul.mubr.bf16.gmra.mxu0 %v64
    %v100 = vpop.f32.mrf.mxu0
    %v101 = vadd.f32 0.0, %v100
    %v102 = vpop.f32.mrf.mxu0
    %v103 = vpop.f32.mrf.mxu0
    %v104 = vadd.f32 0.0, %v103
    %v105 = vpop.f32.mrf.mxu0
    %106 = vdwg.mxu0
    %v107 = vadd.f32 %v51, %v101
    %v108 = vadd.f32 %v52, %v104
    %109 = vst.msk [vmem:[#allocation2] sm:$0xff] %vm62, %v107
    %110 = vst.msk [vmem:[#allocation2 + $0x8] sm:$0xff] %vm62, %v108
    // Predicated region
    $region26: #{tpu_custom_call.1} parent=1 // pred_check
      %p111 = pneg %p44
    $region27: #{tpu_custom_call.1} parent=1 // pred_check_branch
      %113 = sbr.rel (%p111) target = $region29
    $region28: #{tpu_custom_call.1} parent=1 // pred_region
      %v114 = vld [vmem:[#allocation2] sm:$0xff]
      %v115 = vld [vmem:[#allocation2 + $0x8] sm:$0xff]
      %v116 = vld [vmem:[%s2] sm:$0x1]
      %v118 = vlaneseq
      %v119 = vshrl.u32 %v118, 7
      %v120 = vsub.s32 0, %v119
      %v121 = vrot.slane %v116, %v120
      %v123 = vadd.f32 %v114, %v121
      %v124 = vadd.f32 %v115, %v121
      %125 = vst.msk [vmem:[#allocation8] sm:$0xff] %vm62, %v123
      %126 = vst.msk [vmem:[#allocation8 + $0x8] sm:$0xff] %vm62, %v124
    $region29: #{tpu_custom_call.1} parent=1 // pred_fallthru
      _
    // Predicated region
    $region30: #{tpu_custom_call.1} parent=1 // pred_check
      _
    $region31: #{tpu_custom_call.1} parent=1 // pred_check_branch
      %128 = sbr.rel (0) target = $region33
    $region32: #{tpu_custom_call.1} parent=1 // pred_region
      %s130 = ssub.s32 256, 256
      %131 = vsyncadd [#allocation5], %s130
      %s132 = sshll.u32 [#allocation8], 4
      %s133 = int_to_ptr.vmem [resolvable:$true] %s132
      %138 = dma.vmem_to_hbm [thread:$0]  %s133, 256, %s3, [#allocation5], 128, 128, 8
    $region33: #{tpu_custom_call.1} parent=1 // pred_fallthru
      _
    // Predicated region
    $region34: #{tpu_custom_call.1} parent=1 // pred_check
      _
    $region35: #{tpu_custom_call.1} parent=1 // pred_check_branch
      %140 = sbr.rel (0) target = $region37
    $region36: #{tpu_custom_call.1} parent=1 // pred_region
      %141 = dma.done [#allocation5], 256
    $region37: #{tpu_custom_call.1} parent=1 // pred_fallthru
      _
    %142 = vsyncpa [#allocation4], 1
    %143 = vsyncpa [#allocation7], 1
    %144 = vsyncpa [#allocation5], 1

</llo_original>
